<compile_context>
chip_gen: v7x
topology: tpu7x:2x2x1
jax: 0.10.0
libtpu: 0.0.40
codegen_flags: <defaults>
</compile_context>

<pallas_src>
import functools
import math

import jax
import jax.numpy as jnp
from jax.experimental import pallas as pl
from jax.experimental.pallas import tpu as pltpu

_LANES = 128


def _scalar_mix_kernel(w_ref, *refs, n_layers):
    # w_ref : SMEM, shape (n_layers,) f32 = gamma * softmax(weights)  (gamma folded)
    # refs  : n_layers input tiles (tile_rows, 128) in VMEM, then the output tile.
    out_ref = refs[n_layers]
    acc = w_ref[0] * refs[0][...].astype(jnp.float32)
    for k in range(1, n_layers):                 # static unroll over layers
        acc = acc + w_ref[k] * refs[k][...].astype(jnp.float32)
    out_ref[...] = acc.astype(out_ref.dtype)


def scalar_mix(tensors, weights, gamma, *, target_tile_rows=2048):
    """tensors: list of N arrays of identical shape (float32 or bf16).
    weights: (N,) unnormalized mixing weights.  gamma: scalar."""
    n_layers = len(tensors)
    shape = tensors[0].shape
    dtype = tensors[0].dtype
    total = math.prod(shape)

    # Glue: softmax over N scalars, gamma folded in.
    # TODO(synk): weight dropout is a training-time stochastic op; eval /
    # inference (p=0) is the identity, which is what's implemented here.
    wg = (jnp.reshape(gamma, ()).astype(jnp.float32)
          * jax.nn.softmax(weights.astype(jnp.float32), axis=-1))

    # Lane-dense flat view: tile a contiguous (rows, 128) view of each tensor.
    rows = pl.cdiv(total, _LANES)

    # Row tile: multiple of 8 (sublane quantum), capped by a VMEM budget that
    # leaves headroom on v7x (64 MiB physical) with double-buffered (N+1) blocks.
    if rows >= target_tile_rows:
        tile_rows = target_tile_rows
    else:
        tile_rows = 8 * pl.cdiv(rows, 8)
    itemsize = max(jnp.dtype(dtype).itemsize, 4)      # f32 accumulator-side bound
    vmem_budget = 40 * 1024 * 1024
    while (tile_rows > 8
           and 2 * (n_layers + 1) * tile_rows * _LANES * itemsize > vmem_budget):
        tile_rows = 8 * pl.cdiv(tile_rows // 2, 8)

    grid_m = pl.cdiv(rows, tile_rows)
    rows_padded = grid_m * tile_rows
    padded_total = rows_padded * _LANES

    def to_tile_view(t):
        flat = t.reshape(-1)                           # metadata-only
        if padded_total != total:
            flat = jnp.pad(flat, (0, padded_total - total))
        return flat.reshape(rows_padded, _LANES)

    xs = [to_tile_view(t) for t in tensors]

    kernel = functools.partial(_scalar_mix_kernel, n_layers=n_layers)
    tile_spec = pl.BlockSpec((tile_rows, _LANES), lambda i: (i, 0))

    out_flat = pl.pallas_call(
        kernel,
        out_shape=jax.ShapeDtypeStruct((rows_padded, _LANES), dtype),
        grid_spec=pltpu.PrefetchScalarGridSpec(
            num_scalar_prefetch=0,
            grid=(grid_m,),
            in_specs=[pl.BlockSpec(memory_space=pltpu.MemorySpace.SMEM)]
            + [tile_spec] * n_layers,
            out_specs=tile_spec,
        ),
        compiler_params=pltpu.CompilerParams(
            dimension_semantics=("parallel",),   # shards the row loop across TCs (v7x)
            vmem_limit_bytes=48 * 1024 * 1024,   # above v5e's 16 MiB default, below v7x physical
        ),
    )(wg, *xs)

    out = out_flat.reshape(-1)
    if padded_total != total:
        out = out[:total]
    return out.reshape(shape)


if __name__ == "__main__":
    key = jax.random.PRNGKey(0)

    n_layers = 4
    B, S, H = 2, 8, 32

    keys = jax.random.split(key, n_layers)
    tensors = [jax.random.normal(k, (B, S, H), dtype=jnp.float32) for k in keys]

    # Deterministic parameter init matching the module's __init__:
    # weights = zeros(n_layers), gamma = 1.0
    weights = jnp.zeros((n_layers,), dtype=jnp.float32)
    gamma = jnp.asarray(1.0, dtype=jnp.float32)

    out = scalar_mix(tensors, weights, gamma)
    out = jax.block_until_ready(out)

    # Reference check (pure JAX)
    normed = jax.nn.softmax(weights, axis=-1)
    ref = gamma * sum(w * t for w, t in zip(normed, tensors))
    assert out.shape == (B, S, H)
    assert jnp.allclose(out, ref, atol=1e-5, rtol=1e-5)

    print("KERNEL_OK")
</pallas_src>

<mosaic_0001>
module attributes {stable_mosaic.version = 11 : i64} {
  func.func @_scalar_mix_kernel(%arg0: i32, %arg1: memref<4xf32, #tpu.memory_space<smem>>, %arg2: memref<8x128xf32, #tpu.memory_space<vmem>>, %arg3: memref<8x128xf32, #tpu.memory_space<vmem>>, %arg4: memref<8x128xf32, #tpu.memory_space<vmem>>, %arg5: memref<8x128xf32, #tpu.memory_space<vmem>>, %arg6: memref<8x128xf32, #tpu.memory_space<vmem>>) attributes {dimension_semantics = [#tpu.dimension_semantics<parallel>], iteration_bounds = array<i64: 1>, scalar_prefetch = 0 : i64, scratch_operands = 0 : i64, tpu.core_type = #tpu.core_type<tc>, window_params = [{transform_indices = @transform_0, window_bounds = array<i64: 4>}, {transform_indices = @transform_1, window_bounds = array<i64: 8, 128>}, {transform_indices = @transform_2, window_bounds = array<i64: 8, 128>}, {transform_indices = @transform_3, window_bounds = array<i64: 8, 128>}, {transform_indices = @transform_4, window_bounds = array<i64: 8, 128>}, {transform_indices = @transform_5, window_bounds = array<i64: 8, 128>}]} {
    %c0 = arith.constant 0 : index
    %0 = memref.load %arg1[%c0] : memref<4xf32, #tpu.memory_space<smem>>
    %c0_0 = arith.constant 0 : index
    %c0_1 = arith.constant 0 : index
    %1 = vector.load %arg2[%c0_0, %c0_1] : memref<8x128xf32, #tpu.memory_space<vmem>>, vector<8x128xf32>
    %2 = vector.broadcast %0 : f32 to vector<8x128xf32>
    %3 = arith.mulf %2, %1 : vector<8x128xf32>
    %c1 = arith.constant 1 : index
    %4 = memref.load %arg1[%c1] : memref<4xf32, #tpu.memory_space<smem>>
    %c0_2 = arith.constant 0 : index
    %c0_3 = arith.constant 0 : index
    %5 = vector.load %arg3[%c0_2, %c0_3] : memref<8x128xf32, #tpu.memory_space<vmem>>, vector<8x128xf32>
    %6 = vector.broadcast %4 : f32 to vector<8x128xf32>
    %7 = arith.mulf %6, %5 : vector<8x128xf32>
    %8 = arith.addf %3, %7 : vector<8x128xf32>
    %c2 = arith.constant 2 : index
    %9 = memref.load %arg1[%c2] : memref<4xf32, #tpu.memory_space<smem>>
    %c0_4 = arith.constant 0 : index
    %c0_5 = arith.constant 0 : index
    %10 = vector.load %arg4[%c0_4, %c0_5] : memref<8x128xf32, #tpu.memory_space<vmem>>, vector<8x128xf32>
    %11 = vector.broadcast %9 : f32 to vector<8x128xf32>
    %12 = arith.mulf %11, %10 : vector<8x128xf32>
    %13 = arith.addf %8, %12 : vector<8x128xf32>
    %c3 = arith.constant 3 : index
    %14 = memref.load %arg1[%c3] : memref<4xf32, #tpu.memory_space<smem>>
    %c0_6 = arith.constant 0 : index
    %c0_7 = arith.constant 0 : index
    %15 = vector.load %arg5[%c0_6, %c0_7] : memref<8x128xf32, #tpu.memory_space<vmem>>, vector<8x128xf32>
    %16 = vector.broadcast %14 : f32 to vector<8x128xf32>
    %17 = arith.mulf %16, %15 : vector<8x128xf32>
    %18 = arith.addf %13, %17 : vector<8x128xf32>
    %c0_8 = arith.constant 0 : index
    %c0_9 = arith.constant 0 : index
    %19 = vector.load %arg6[%c0_8, %c0_9] : memref<8x128xf32, #tpu.memory_space<vmem>>, vector<8x128xf32>
    tpu.vector_store %arg6[%c0_8, %c0_9], %18 {strides = array<i32>} : memref<8x128xf32, #tpu.memory_space<vmem>>, vector<8x128xf32>,
    return
  }
  func.func @transform_0(%arg0: i32) -> i32 {
    %c0_i32 = arith.constant 0 : i32
    %c0_i32_0 = arith.constant 0 : i32
    return %c0_i32 : i32
  }
  func.func @transform_1(%arg0: i32) -> (i32, i32) {
    %c0_i32 = arith.constant 0 : i32
    %c0_i32_0 = arith.constant 0 : i32
    return %arg0, %c0_i32 : i32, i32
  }
  func.func @transform_2(%arg0: i32) -> (i32, i32) {
    %c0_i32 = arith.constant 0 : i32
    %c0_i32_0 = arith.constant 0 : i32
    return %arg0, %c0_i32 : i32, i32
  }
  func.func @transform_3(%arg0: i32) -> (i32, i32) {
    %c0_i32 = arith.constant 0 : i32
    %c0_i32_0 = arith.constant 0 : i32
    return %arg0, %c0_i32 : i32, i32
  }
  func.func @transform_4(%arg0: i32) -> (i32, i32) {
    %c0_i32 = arith.constant 0 : i32
    %c0_i32_0 = arith.constant 0 : i32
    return %arg0, %c0_i32 : i32, i32
  }
  func.func @transform_5(%arg0: i32) -> (i32, i32) {
    %c0_i32 = arith.constant 0 : i32
    %c0_i32_0 = arith.constant 0 : i32
    return %arg0, %c0_i32 : i32, i32
  }
}

</mosaic_0001>

<llo_original>
// kernel: tpu_custom_call.1
$region0: #{tpu_custom_call.1}
  #allocation0 [shape = 'u32[]', space=smem, size = 0x4, offset = 0x4, fixed_abs, tag = 'smem constant byte address 0x4 - core index']
  #allocation1 [shape = 'u32[144,128]{1,0:T(1,128)}', space=vmem, size = 0x12000, scoped, tag = 'internal scratch']
  %s0 = inlined_call_operand.hbm [shape: f32[4], index: 0, kind: input, shape index: {}]
  %s1 = inlined_call_operand.hbm [shape: f32[8,128], index: 1, kind: input, shape index: {}]
  %s2 = inlined_call_operand.hbm [shape: f32[8,128], index: 2, kind: input, shape index: {}]
  %s3 = inlined_call_operand.vmem [shape: f32[8,128], index: 3, kind: input, shape index: {}]
  %s4 = inlined_call_operand.hbm [shape: f32[8,128], index: 4, kind: input, shape index: {}]
  %s5 = inlined_call_operand.hbm [shape: f32[8,128], index: 5, kind: output, shape index: {}]
  %s6 = sld [smem:[#allocation0]]
  $region46: #{tpu_custom_call.1} parent=0
    _
  %s8 = ssub.s32 1, %s6
  %s9 = scalar_select 0, %s8, %s6
  $region1: #{tpu_custom_call.1} parent=0
    #allocation2 [shape = 'u8[512]{0}', space=smem, size = 0x200, scoped, tag = 'input window, operand 0, single buffered']
    #allocation3 [shape = 's32[1]{0}', space=sflag, size = 0x4, scoped, tag = 'scoped memory for tpu_custom_call.1']
    #allocation4 [shape = 's32[1]{0}', space=sflag, size = 0x4, scoped, tag = 'scoped memory for tpu_custom_call.1']
    #allocation5 [shape = 's32[1]{0}', space=sflag, size = 0x4, scoped, tag = 'scoped memory for tpu_custom_call.1']
    #allocation6 [shape = 'u8[4096]{0}', space=vmem, size = 0x1000, scoped, tag = 'input window, operand 1, single buffered']
    #allocation7 [shape = 'u8[4096]{0}', space=vmem, size = 0x1000, scoped, tag = 'input window, operand 2, single buffered']
    #allocation8 [shape = 's32[1]{0}', space=sflag, size = 0x4, scoped, tag = 'scoped memory for tpu_custom_call.1']
    #allocation9 [shape = 'u8[4096]{0}', space=vmem, size = 0x1000, scoped, tag = 'input window, operand 4, single buffered']
    #allocation10 [shape = 'u8[4096]{0}', space=vmem, size = 0x1000, scoped, tag = 'output window, operand 0, single buffered']
    %10 = vsyncpa [#allocation5], 0
    %11 = vsyncpa [#allocation3], 0
    %12 = vsyncpa [#allocation8], 0
    %13 = vsyncpa [#allocation4], 0
    // Predicated region
    $region2: #{tpu_custom_call.1} parent=1 // pred_check
      _
    $region3: #{tpu_custom_call.1} parent=1 // pred_check_branch
      %15 = sbr.rel (0) target = $region5
    $region4: #{tpu_custom_call.1} parent=1 // pred_region
      %s17 = ssub.s32 16, 16
      %18 = vsyncadd [#allocation5], %s17
      %21 = dma.hbm_to_smem %s0, 16, [#allocation2], [#allocation5]
    $region5: #{tpu_custom_call.1} parent=1 // pred_fallthru
      _
    // Predicated region
    $region6: #{tpu_custom_call.1} parent=1 // pred_check
      _
    $region7: #{tpu_custom_call.1} parent=1 // pred_check_branch
      %23 = sbr.rel (0) target = $region9
    $region8: #{tpu_custom_call.1} parent=1 // pred_region
      %s25 = ssub.s32 128, 128
      %26 = vsyncadd [#allocation3], %s25
      %s28 = sshll.u32 [#allocation6], 4
      %s29 = int_to_ptr.vmem [resolvable:$true] %s28
      %31 = dma.hbm_to_vmem [thread:$0]  %s1, 128, %s29, [#allocation3]
    $region9: #{tpu_custom_call.1} parent=1 // pred_fallthru
      _
    // Predicated region
    $region10: #{tpu_custom_call.1} parent=1 // pred_check
      _
    $region11: #{tpu_custom_call.1} parent=1 // pred_check_branch
      %33 = sbr.rel (0) target = $region13
    $region12: #{tpu_custom_call.1} parent=1 // pred_region
      %s35 = ssub.s32 128, 128
      %36 = vsyncadd [#allocation8], %s35
      %s38 = sshll.u32 [#allocation7], 4
      %s39 = int_to_ptr.vmem [resolvable:$true] %s38
      %41 = dma.hbm_to_vmem [thread:$0]  %s2, 128, %s39, [#allocation8]
    $region13: #{tpu_custom_call.1} parent=1 // pred_fallthru
      _
    // Predicated region
    $region14: #{tpu_custom_call.1} parent=1 // pred_check
      _
    $region15: #{tpu_custom_call.1} parent=1 // pred_check_branch
      %43 = sbr.rel (0) target = $region17
    $region16: #{tpu_custom_call.1} parent=1 // pred_region
      _
    $region17: #{tpu_custom_call.1} parent=1 // pred_fallthru
      _
    // Predicated region
    $region18: #{tpu_custom_call.1} parent=1 // pred_check
      _
    $region19: #{tpu_custom_call.1} parent=1 // pred_check_branch
      %45 = sbr.rel (0) target = $region21
    $region20: #{tpu_custom_call.1} parent=1 // pred_region
      %s47 = ssub.s32 128, 128
      %48 = vsyncadd [#allocation8], %s47
      %s50 = sshll.u32 [#allocation9], 4
      %s51 = int_to_ptr.vmem [resolvable:$true] %s50
      %53 = dma.hbm_to_vmem [thread:$0]  %s4, 128, %s51, [#allocation8]
    $region21: #{tpu_custom_call.1} parent=1 // pred_fallthru
      _
    // Predicated region
    $region22: #{tpu_custom_call.1} parent=1 // pred_check
      _
    $region23: #{tpu_custom_call.1} parent=1 // pred_check_branch
      %55 = sbr.rel (0) target = $region25
    $region24: #{tpu_custom_call.1} parent=1 // pred_region
      %56 = dma.done [#allocation5], 16
    $region25: #{tpu_custom_call.1} parent=1 // pred_fallthru
      _
    // Predicated region
    $region26: #{tpu_custom_call.1} parent=1 // pred_check
      _
    $region27: #{tpu_custom_call.1} parent=1 // pred_check_branch
      %58 = sbr.rel (0) target = $region29
    $region28: #{tpu_custom_call.1} parent=1 // pred_region
      %59 = dma.done [#allocation3], 128
    $region29: #{tpu_custom_call.1} parent=1 // pred_fallthru
      _
    // Predicated region
    $region30: #{tpu_custom_call.1} parent=1 // pred_check
      _
    $region31: #{tpu_custom_call.1} parent=1 // pred_check_branch
      %61 = sbr.rel (0) target = $region33
    $region32: #{tpu_custom_call.1} parent=1 // pred_region
      %62 = dma.done [#allocation8], 128
    $region33: #{tpu_custom_call.1} parent=1 // pred_fallthru
      _
    // Predicated region
    $region34: #{tpu_custom_call.1} parent=1 // pred_check
      _
    $region35: #{tpu_custom_call.1} parent=1 // pred_check_branch
      %64 = sbr.rel (0) target = $region37
    $region36: #{tpu_custom_call.1} parent=1 // pred_region
      %65 = dma.done [#allocation8], 128
    $region37: #{tpu_custom_call.1} parent=1 // pred_fallthru
      _
    %66 = sfence
    %s67 = sld [smem:[#allocation2]]
    %v68 = vld [vmem:[#allocation6] sm:$0xff]
    %v69 = vstv %s67
    %v70 = vmul.f32 %v69, %v68
    %s71 = sld [smem:[#allocation2 + $0x1]]
    %v72 = vld [vmem:[#allocation7] sm:$0xff]
    %v73 = vstv %s71
    %v74 = vmul.f32 %v73, %v72
    %v75 = vadd.f32 %v70, %v74
    %s76 = sld [smem:[#allocation2 + $0x2]]
    %v77 = vld [vmem:[%s3] sm:$0xff]
    %v78 = vstv %s76
    %v79 = vmul.f32 %v78, %v77
    %v80 = vadd.f32 %v75, %v79
    %s81 = sld [smem:[#allocation2 + $0x3]]
    %v82 = vld [vmem:[#allocation9] sm:$0xff]
    %v83 = vstv %s81
    %v84 = vmul.f32 %v83, %v82
    %v85 = vadd.f32 %v80, %v84
    %86 = vst [vmem:[#allocation10] sm:$0xff] %v85
    // Predicated region
    $region38: #{tpu_custom_call.1} parent=1 // pred_check
      _
    $region39: #{tpu_custom_call.1} parent=1 // pred_check_branch
      %88 = sbr.rel (0) target = $region41
    $region40: #{tpu_custom_call.1} parent=1 // pred_region
      %s90 = ssub.s32 128, 128
      %91 = vsyncadd [#allocation4], %s90
      %s93 = sshll.u32 [#allocation10], 4
      %s94 = int_to_ptr.vmem [resolvable:$true] %s93
      %96 = dma.vmem_to_hbm [thread:$0]  %s94, 128, %s5, [#allocation4]
    $region41: #{tpu_custom_call.1} parent=1 // pred_fallthru
      _
    // Predicated region
    $region42: #{tpu_custom_call.1} parent=1 // pred_check
      _
    $region43: #{tpu_custom_call.1} parent=1 // pred_check_branch
      %98 = sbr.rel (0) target = $region45
    $region44: #{tpu_custom_call.1} parent=1 // pred_region
      %99 = dma.done [#allocation4], 128
    $region45: #{tpu_custom_call.1} parent=1 // pred_fallthru
      _
    %100 = vsyncpa [#allocation3], 1
    %101 = vsyncpa [#allocation8], 1
    %102 = vsyncpa [#allocation4], 1
    %103 = vsyncpa [#allocation5], 1

</llo_original>
